<compile_context>
chip_gen: v6e
topology: v6e:2x2x1
jax: 0.10.0
libtpu: 0.0.40
codegen_flags: <defaults>
</compile_context>

<pallas_src>
import functools

import jax
import jax.numpy as jnp
from jax import lax
from jax.experimental import pallas as pl
from jax.experimental.pallas import tpu as pltpu


def _upsample_conv_kernel(RB, W, ke, shifts, x_ref, w_ref, b_ref, out_ref):
    # x_ref  : (1, 1, n_csh, Cin_pad, Rband*W)  band+halo; one copy per column tap offset,
    #          rows flattened into lanes (every tap = contiguous lane slice).
    # w_ref  : (4, Cout, Kf)  per-parity folded weights, Kf = ke*ke*Cin_pad.
    # b_ref  : (Cout, 1) f32.
    # out_ref: (1, 1, 4, Cout, RB*W)  lane-dense output band (one slab store per parity).
    RBW = RB * W
    Cout = w_ref.shape[1]
    bias = jnp.broadcast_to(b_ref[...], (Cout, RBW))        # hoisted: once per grid step

    # Distinct (column-copy d, row-start r0) tap pieces; each emitted at most once per grid
    # step and shared by all four parities.  All slice starts are static multiples of W.
    piece_cache = {}

    def piece(d, r0):
        if (d, r0) not in piece_cache:
            piece_cache[(d, r0)] = x_ref[0, 0, d, :, r0 * W:r0 * W + RBW]   # (Cin_pad, RBW)
        return piece_cache[(d, r0)]

    for t in range(2):                                       # output row parity
        for s in range(2):                                   # output column parity
            rsh, csh = shifts[t], shifts[s]
            # im2col slab for the WHOLE band: ke*ke sublane-aligned pieces -> (Kf, RB*W)
            slab = jnp.concatenate(
                [piece(csh + c, rsh + a) for a in range(ke) for c in range(ke)], axis=0)
            y = jnp.dot(w_ref[2 * t + s], slab,
                        preferred_element_type=jnp.float32) + bias
            out_ref[0, 0, 2 * t + s, :, :] = y.astype(out_ref.dtype)


def upsample_conv(x_nchw, weight, bias, kernel_size):
    """UpSampleConv forward: 2x nearest upsample (cat x4 + DepthToSpace(2)) then k x k conv."""
    N, Cin, H, W = x_nchw.shape
    Cout = weight.shape[0]
    k = kernel_size
    assert k % 2 == 1, "odd kernel_size expected (padding = (k-1)//2)"
    p = (k - 1) // 2
    ke = (k + 1) // 2                                        # per-parity folded kernel extent

    dt = jnp.promote_types(x_nchw.dtype, weight.dtype)       # keep bf16 if upstream is bf16
    itemsize = jnp.dtype(dt).itemsize
    sub = max(8, 32 // itemsize)                             # sublane tile (8 f32 / 16 bf16)
    Cin_pad = -(-Cin // sub) * sub

    # ---- sub-pixel decomposition (tiny, wrapper-side) ------------------------------------
    # output pixel (2i+t, 2j+s) = sum_{a,c,ci} w_eff[t,s,:,a,c,ci] * x[i+base_t+a, j+base_s+c]
    base = [(t - p) // 2 for t in (0, 1)]
    shifts = tuple(bt - min(base) for bt in base)            # start offsets in the padded input
    pe_lo = -min(base)
    pe_hi = max(base) + ke - 1
    n_csh = max(shifts) + ke                                 # distinct row/col tap offsets

    w = weight.astype(dt)
    w_eff = jnp.zeros((2, 2, Cout, ke, ke, Cin_pad), dt)     # zeros at padded Cin positions
    for t in range(2):
        for s in range(2):
            for kh in range(k):
                a = (t + kh - p) // 2 - base[t]
                for kw in range(k):
                    c = (s + kw - p) // 2 - base[s]
                    w_eff = w_eff.at[t, s, :, a, c, :Cin].add(w[:, :, kh, kw])
    Kf = ke * ke * Cin_pad
    w_flat = w_eff.reshape(4, Cout, Kf)                      # parity-major; matches slab order
    b_col = bias.reshape(Cout, 1).astype(jnp.float32)

    # ---- generation-aware VMEM budget & band size ------------------------------------------
    try:
        cap = getattr(pltpu.get_tpu_info(), "vmem_capacity_bytes", None) or (64 << 20)
    except Exception:
        cap = 64 << 20                                       # v7x-safe fallback
    vmem_budget = int(0.75 * cap)                            # headroom for compiler scratch

    def band_bytes(rb):                                      # double-buffered input + output band
        rband = rb + n_csh - 1
        in_b = n_csh * Cin_pad * rband * W * itemsize
        out_b = 4 * Cout * rb * W * itemsize
        return 2 * (in_b + out_b)

    divisors = [d for d in range(1, H + 1) if H % d == 0]
    fitting = [d for d in divisors if band_bytes(d) <= vmem_budget // 2] or [1]
    lane_ok = [d for d in fitting if d * W <= 2048]
    pref = [d for d in lane_ok if (d * W) % 128 == 0]        # unmasked (lane-dense) stores
    RB = max(pref) if pref else (max(lane_ok) if lane_ok else min(fitting))
    n_bands = H // RB
    Rband = RB + n_csh - 1                                   # band rows incl. halo

    # ---- layout plumbing: column-shifted copies, overlapping row bands, rows -> lanes ------
    xq = jnp.pad(x_nchw.astype(dt),
                 ((0, 0), (0, Cin_pad - Cin), (pe_lo, pe_hi), (pe_lo, pe_hi)))
    # (N, n_csh, Cin_pad, H + n_csh - 1, W): one copy per column tap offset
    cols = jnp.stack([xq[:, :, :, d:d + W] for d in range(n_csh)], axis=1)
    # overlapping row bands (only the tiny halo is duplicated in HBM)
    row_idx = jnp.arange(n_bands)[:, None] * RB + jnp.arange(Rband)[None, :]
    bands = cols[:, :, :, row_idx, :]                        # (N, n_csh, Cin_pad, n_bands, Rband, W)
    bands = jnp.transpose(bands, (0, 3, 1, 2, 4, 5))         # (N, n_bands, n_csh, Cin_pad, Rband, W)
    x_in = bands.reshape(N, n_bands, n_csh, Cin_pad, Rband * W)

    kernel = functools.partial(_upsample_conv_kernel, RB, W, ke, shifts)

    w_bytes = (4 * Cout * Kf + Cout) * 4
    vmem_limit = int(min(vmem_budget, max(4 * band_bytes(RB) + 2 * w_bytes, 16 << 20)))

    out5 = pl.pallas_call(
        kernel,
        out_shape=jax.ShapeDtypeStruct((N, n_bands, 4, Cout, RB * W), dt),
        grid=(N, n_bands),
        in_specs=[
            pl.BlockSpec((1, 1, n_csh, Cin_pad, Rband * W), lambda n, h: (n, h, 0, 0, 0)),
            pl.BlockSpec((4, Cout, Kf), lambda n, h: (0, 0, 0)),
            pl.BlockSpec((Cout, 1), lambda n, h: (0, 0)),
        ],
        out_specs=pl.BlockSpec((1, 1, 4, Cout, RB * W), lambda n, h: (n, h, 0, 0, 0)),
        compiler_params=pltpu.CompilerParams(
            dimension_semantics=("parallel", "parallel"),
            vmem_limit_bytes=vmem_limit),
    )(x_in, w_flat, b_col)

    # interleave parities: output row 2*(h*RB + i) + t, output col 2*j + s
    out7 = out5.reshape(N, n_bands, 2, 2, Cout, RB, W)
    out = jnp.transpose(out7, (0, 4, 1, 5, 2, 6, 3)).reshape(N, Cout, 2 * H, 2 * W)
    return out


def _ref_forward(x, w, b, k):
    """Pure-JAX mirror of UpSampleConv.forward (cat x4 -> DepthToSpace(2) -> conv), NCHW."""
    p = (k - 1) // 2
    N, C, H, W = x.shape
    t = jnp.concatenate([x, x, x, x], axis=1)                      # (N, 4C, H, W)
    t = jnp.transpose(t, (0, 2, 3, 1)).reshape(N, H, W, 4, C)      # (N, H, W, 4, C)
    chunks = [t[:, :, :, 2 * i:2 * i + 2, :].reshape(N, H, 2 * W, C) for i in range(2)]
    t = jnp.stack(chunks, axis=0)                                  # (2, N, H, 2W, C)
    t = jnp.transpose(t, (1, 0, 2, 3, 4))                          # (N, 2, H, 2W, C)
    t = jnp.transpose(t, (0, 2, 1, 3, 4)).reshape(N, 2 * H, 2 * W, C)
    up = jnp.transpose(t, (0, 3, 1, 2))                            # (N, C, 2H, 2W)
    y = lax.conv_general_dilated(up, w, (1, 1), [(p, p), (p, p)],
                                 dimension_numbers=("NCHW", "OIHW", "NCHW"))
    return y + b.reshape(1, -1, 1, 1)


if __name__ == "__main__":
    N, Cin, Cout, H, W, k = 2, 4, 8, 16, 16, 3

    key = jax.random.PRNGKey(0)
    kx, kw, kb = jax.random.split(key, 3)
    x = jax.random.normal(kx, (N, Cin, H, W), jnp.float32)
    weight = jax.random.normal(kw, (Cout, Cin, k, k), jnp.float32) * 0.1
    bias = jax.random.normal(kb, (Cout,), jnp.float32) * 0.1

    out = upsample_conv(x, weight, bias, k)
    out = jax.block_until_ready(out)

    ref = _ref_forward(x, weight, bias, k)
    assert out.shape == (N, Cout, 2 * H, 2 * W), out.shape
    max_err = float(jnp.max(jnp.abs(out - ref)))
    assert jnp.allclose(out, ref, atol=1e-4, rtol=1e-4), f"max_err={max_err}"

    print("KERNEL_OK")
</pallas_src>

<mosaic_0001>
module attributes {stable_mosaic.version = 11 : i64} {
  func.func @_upsample_conv_kernel(%arg0: i32, %arg1: i32, %arg2: memref<1x1x3x8x288xf32, #tpu.memory_space<vmem>>, %arg3: memref<4x8x32xf32, #tpu.memory_space<vmem>>, %arg4: memref<8x1xf32, #tpu.memory_space<vmem>>, %arg5: memref<1x1x4x8x256xf32, #tpu.memory_space<vmem>>) attributes {dimension_semantics = [#tpu.dimension_semantics<parallel>, #tpu.dimension_semantics<parallel>], iteration_bounds = array<i64: 2, 1>, scalar_prefetch = 0 : i64, scratch_operands = 0 : i64, tpu.core_type = #tpu.core_type<tc>, window_params = [{transform_indices = @transform_0, window_bounds = array<i64: 1, 1, 3, 8, 288>}, {pipeline_mode = #tpu.pipeline_mode<synchronous>, transform_indices = @transform_1, window_bounds = array<i64: 4, 8, 32>}, {pipeline_mode = #tpu.pipeline_mode<synchronous>, transform_indices = @transform_2, window_bounds = array<i64: 8, 1>}, {transform_indices = @transform_3, window_bounds = array<i64: 1, 1, 4, 8, 256>}]} {
    %c0 = arith.constant 0 : index
    %c0_0 = arith.constant 0 : index
    %0 = vector.load %arg4[%c0, %c0_0] : memref<8x1xf32, #tpu.memory_space<vmem>>, vector<8x1xf32>
    %1 = vector.shape_cast %0 : vector<8x1xf32> to vector<8x1xf32>
    %2 = vector.broadcast %1 : vector<8x1xf32> to vector<8x256xf32>
    %c0_1 = arith.constant 0 : index
    %c0_2 = arith.constant 0 : index
    %c0_3 = arith.constant 0 : index
    %c0_4 = arith.constant 0 : index
    %c0_5 = arith.constant 0 : index
    %3 = vector.load %arg2[%c0_1, %c0_2, %c0_3, %c0_4, %c0_5] : memref<1x1x3x8x288xf32, #tpu.memory_space<vmem>>, vector<1x1x1x8x256xf32>
    %4 = vector.shape_cast %3 : vector<1x1x1x8x256xf32> to vector<8x256xf32>
    %c0_6 = arith.constant 0 : index
    %c0_7 = arith.constant 0 : index
    %c1 = arith.constant 1 : index
    %c0_8 = arith.constant 0 : index
    %c0_9 = arith.constant 0 : index
    %5 = vector.load %arg2[%c0_6, %c0_7, %c1, %c0_8, %c0_9] : memref<1x1x3x8x288xf32, #tpu.memory_space<vmem>>, vector<1x1x1x8x256xf32>
    %6 = vector.shape_cast %5 : vector<1x1x1x8x256xf32> to vector<8x256xf32>
    %c0_10 = arith.constant 0 : index
    %c0_11 = arith.constant 0 : index
    %c0_12 = arith.constant 0 : index
    %c0_13 = arith.constant 0 : index
    %c16 = arith.constant 16 : index
    %7 = vector.load %arg2[%c0_10, %c0_11, %c0_12, %c0_13, %c16] : memref<1x1x3x8x288xf32, #tpu.memory_space<vmem>>, vector<1x1x1x8x256xf32>
    %8 = vector.shape_cast %7 : vector<1x1x1x8x256xf32> to vector<8x256xf32>
    %c0_14 = arith.constant 0 : index
    %c0_15 = arith.constant 0 : index
    %c1_16 = arith.constant 1 : index
    %c0_17 = arith.constant 0 : index
    %c16_18 = arith.constant 16 : index
    %9 = vector.load %arg2[%c0_14, %c0_15, %c1_16, %c0_17, %c16_18] : memref<1x1x3x8x288xf32, #tpu.memory_space<vmem>>, vector<1x1x1x8x256xf32>
    %10 = vector.shape_cast %9 : vector<1x1x1x8x256xf32> to vector<8x256xf32>
    %11 = tpu.concatenate %4, %6, %8, %10 in 0 : vector<8x256xf32>, vector<8x256xf32>, vector<8x256xf32>, vector<8x256xf32> -> vector<32x256xf32>
    %c0_19 = arith.constant 0 : index
    %c0_20 = arith.constant 0 : index
    %c0_21 = arith.constant 0 : index
    %12 = vector.load %arg3[%c0_19, %c0_20, %c0_21] : memref<4x8x32xf32, #tpu.memory_space<vmem>>, vector<1x8x32xf32>
    %13 = vector.shape_cast %12 : vector<1x8x32xf32> to vector<8x32xf32>
    %cst = arith.constant dense<0.000000e+00> : vector<8x256xf32>
    %14 = tpu.matmul %13, %11, %cst {dimension_numbers = #tpu.dot_dimension_numbers<[1], [0], [0], [1], [0, 0, 1, 1], [], []>} : vector<8x32xf32>, vector<32x256xf32>, vector<8x256xf32> -> vector<8x256xf32>
    %15 = arith.addf %14, %2 : vector<8x256xf32>
    %c0_22 = arith.constant 0 : index
    %c0_23 = arith.constant 0 : index
    %c0_24 = arith.constant 0 : index
    %c0_25 = arith.constant 0 : index
    %c0_26 = arith.constant 0 : index
    %16 = vector.load %arg5[%c0_22, %c0_23, %c0_24, %c0_25, %c0_26] : memref<1x1x4x8x256xf32, #tpu.memory_space<vmem>>, vector<1x1x1x8x256xf32>
    %17 = vector.shape_cast %16 : vector<1x1x1x8x256xf32> to vector<8x256xf32>
    %18 = vector.shape_cast %15 : vector<8x256xf32> to vector<1x1x1x8x256xf32>
    tpu.vector_store %arg5[%c0_22, %c0_23, %c0_24, %c0_25, %c0_26], %18 {strides = array<i32>} : memref<1x1x4x8x256xf32, #tpu.memory_space<vmem>>, vector<1x1x1x8x256xf32>,
    %c0_27 = arith.constant 0 : index
    %c0_28 = arith.constant 0 : index
    %c2 = arith.constant 2 : index
    %c0_29 = arith.constant 0 : index
    %c0_30 = arith.constant 0 : index
    %19 = vector.load %arg2[%c0_27, %c0_28, %c2, %c0_29, %c0_30] : memref<1x1x3x8x288xf32, #tpu.memory_space<vmem>>, vector<1x1x1x8x256xf32>
    %20 = vector.shape_cast %19 : vector<1x1x1x8x256xf32> to vector<8x256xf32>
    %c0_31 = arith.constant 0 : index
    %c0_32 = arith.constant 0 : index
    %c2_33 = arith.constant 2 : index
    %c0_34 = arith.constant 0 : index
    %c16_35 = arith.constant 16 : index
    %21 = vector.load %arg2[%c0_31, %c0_32, %c2_33, %c0_34, %c16_35] : memref<1x1x3x8x288xf32, #tpu.memory_space<vmem>>, vector<1x1x1x8x256xf32>
    %22 = vector.shape_cast %21 : vector<1x1x1x8x256xf32> to vector<8x256xf32>
    %23 = tpu.concatenate %6, %20, %10, %22 in 0 : vector<8x256xf32>, vector<8x256xf32>, vector<8x256xf32>, vector<8x256xf32> -> vector<32x256xf32>
    %c1_36 = arith.constant 1 : index
    %c0_37 = arith.constant 0 : index
    %c0_38 = arith.constant 0 : index
    %24 = vector.load %arg3[%c1_36, %c0_37, %c0_38] : memref<4x8x32xf32, #tpu.memory_space<vmem>>, vector<1x8x32xf32>
    %25 = vector.shape_cast %24 : vector<1x8x32xf32> to vector<8x32xf32>
    %cst_39 = arith.constant dense<0.000000e+00> : vector<8x256xf32>
    %26 = tpu.matmul %25, %23, %cst_39 {dimension_numbers = #tpu.dot_dimension_numbers<[1], [0], [0], [1], [0, 0, 1, 1], [], []>} : vector<8x32xf32>, vector<32x256xf32>, vector<8x256xf32> -> vector<8x256xf32>
    %27 = arith.addf %26, %2 : vector<8x256xf32>
    %c0_40 = arith.constant 0 : index
    %c0_41 = arith.constant 0 : index
    %c1_42 = arith.constant 1 : index
    %c0_43 = arith.constant 0 : index
    %c0_44 = arith.constant 0 : index
    %28 = vector.load %arg5[%c0_40, %c0_41, %c1_42, %c0_43, %c0_44] : memref<1x1x4x8x256xf32, #tpu.memory_space<vmem>>, vector<1x1x1x8x256xf32>
    %29 = vector.shape_cast %28 : vector<1x1x1x8x256xf32> to vector<8x256xf32>
    %30 = vector.shape_cast %27 : vector<8x256xf32> to vector<1x1x1x8x256xf32>
    tpu.vector_store %arg5[%c0_40, %c0_41, %c1_42, %c0_43, %c0_44], %30 {strides = array<i32>} : memref<1x1x4x8x256xf32, #tpu.memory_space<vmem>>, vector<1x1x1x8x256xf32>,
    %c0_45 = arith.constant 0 : index
    %c0_46 = arith.constant 0 : index
    %c0_47 = arith.constant 0 : index
    %c0_48 = arith.constant 0 : index
    %c32 = arith.constant 32 : index
    %31 = vector.load %arg2[%c0_45, %c0_46, %c0_47, %c0_48, %c32] : memref<1x1x3x8x288xf32, #tpu.memory_space<vmem>>, vector<1x1x1x8x256xf32>
    %32 = vector.shape_cast %31 : vector<1x1x1x8x256xf32> to vector<8x256xf32>
    %c0_49 = arith.constant 0 : index
    %c0_50 = arith.constant 0 : index
    %c1_51 = arith.constant 1 : index
    %c0_52 = arith.constant 0 : index
    %c32_53 = arith.constant 32 : index
    %33 = vector.load %arg2[%c0_49, %c0_50, %c1_51, %c0_52, %c32_53] : memref<1x1x3x8x288xf32, #tpu.memory_space<vmem>>, vector<1x1x1x8x256xf32>
    %34 = vector.shape_cast %33 : vector<1x1x1x8x256xf32> to vector<8x256xf32>
    %35 = tpu.concatenate %8, %10, %32, %34 in 0 : vector<8x256xf32>, vector<8x256xf32>, vector<8x256xf32>, vector<8x256xf32> -> vector<32x256xf32>
    %c2_54 = arith.constant 2 : index
    %c0_55 = arith.constant 0 : index
    %c0_56 = arith.constant 0 : index
    %36 = vector.load %arg3[%c2_54, %c0_55, %c0_56] : memref<4x8x32xf32, #tpu.memory_space<vmem>>, vector<1x8x32xf32>
    %37 = vector.shape_cast %36 : vector<1x8x32xf32> to vector<8x32xf32>
    %cst_57 = arith.constant dense<0.000000e+00> : vector<8x256xf32>
    %38 = tpu.matmul %37, %35, %cst_57 {dimension_numbers = #tpu.dot_dimension_numbers<[1], [0], [0], [1], [0, 0, 1, 1], [], []>} : vector<8x32xf32>, vector<32x256xf32>, vector<8x256xf32> -> vector<8x256xf32>
    %39 = arith.addf %38, %2 : vector<8x256xf32>
    %c0_58 = arith.constant 0 : index
    %c0_59 = arith.constant 0 : index
    %c2_60 = arith.constant 2 : index
    %c0_61 = arith.constant 0 : index
    %c0_62 = arith.constant 0 : index
    %40 = vector.load %arg5[%c0_58, %c0_59, %c2_60, %c0_61, %c0_62] : memref<1x1x4x8x256xf32, #tpu.memory_space<vmem>>, vector<1x1x1x8x256xf32>
    %41 = vector.shape_cast %40 : vector<1x1x1x8x256xf32> to vector<8x256xf32>
    %42 = vector.shape_cast %39 : vector<8x256xf32> to vector<1x1x1x8x256xf32>
    tpu.vector_store %arg5[%c0_58, %c0_59, %c2_60, %c0_61, %c0_62], %42 {strides = array<i32>} : memref<1x1x4x8x256xf32, #tpu.memory_space<vmem>>, vector<1x1x1x8x256xf32>,
    %c0_63 = arith.constant 0 : index
    %c0_64 = arith.constant 0 : index
    %c2_65 = arith.constant 2 : index
    %c0_66 = arith.constant 0 : index
    %c32_67 = arith.constant 32 : index
    %43 = vector.load %arg2[%c0_63, %c0_64, %c2_65, %c0_66, %c32_67] : memref<1x1x3x8x288xf32, #tpu.memory_space<vmem>>, vector<1x1x1x8x256xf32>
    %44 = vector.shape_cast %43 : vector<1x1x1x8x256xf32> to vector<8x256xf32>
    %45 = tpu.concatenate %10, %22, %34, %44 in 0 : vector<8x256xf32>, vector<8x256xf32>, vector<8x256xf32>, vector<8x256xf32> -> vector<32x256xf32>
    %c3 = arith.constant 3 : index
    %c0_68 = arith.constant 0 : index
    %c0_69 = arith.constant 0 : index
    %46 = vector.load %arg3[%c3, %c0_68, %c0_69] : memref<4x8x32xf32, #tpu.memory_space<vmem>>, vector<1x8x32xf32>
    %47 = vector.shape_cast %46 : vector<1x8x32xf32> to vector<8x32xf32>
    %cst_70 = arith.constant dense<0.000000e+00> : vector<8x256xf32>
    %48 = tpu.matmul %47, %45, %cst_70 {dimension_numbers = #tpu.dot_dimension_numbers<[1], [0], [0], [1], [0, 0, 1, 1], [], []>} : vector<8x32xf32>, vector<32x256xf32>, vector<8x256xf32> -> vector<8x256xf32>
    %49 = arith.addf %48, %2 : vector<8x256xf32>
    %c0_71 = arith.constant 0 : index
    %c0_72 = arith.constant 0 : index
    %c3_73 = arith.constant 3 : index
    %c0_74 = arith.constant 0 : index
    %c0_75 = arith.constant 0 : index
    %50 = vector.load %arg5[%c0_71, %c0_72, %c3_73, %c0_74, %c0_75] : memref<1x1x4x8x256xf32, #tpu.memory_space<vmem>>, vector<1x1x1x8x256xf32>
    %51 = vector.shape_cast %50 : vector<1x1x1x8x256xf32> to vector<8x256xf32>
    %52 = vector.shape_cast %49 : vector<8x256xf32> to vector<1x1x1x8x256xf32>
    tpu.vector_store %arg5[%c0_71, %c0_72, %c3_73, %c0_74, %c0_75], %52 {strides = array<i32>} : memref<1x1x4x8x256xf32, #tpu.memory_space<vmem>>, vector<1x1x1x8x256xf32>,
    return
  }
  func.func @transform_0(%arg0: i32, %arg1: i32) -> (i32, i32, i32, i32, i32) {
    %c0_i32 = arith.constant 0 : i32
    %c0_i32_0 = arith.constant 0 : i32
    %c0_i32_1 = arith.constant 0 : i32
    %c0_i32_2 = arith.constant 0 : i32
    return %arg0, %arg1, %c0_i32, %c0_i32_0, %c0_i32_1 : i32, i32, i32, i32, i32
  }
  func.func @transform_1(%arg0: i32, %arg1: i32) -> (i32, i32, i32) {
    %c0_i32 = arith.constant 0 : i32
    %c0_i32_0 = arith.constant 0 : i32
    %c0_i32_1 = arith.constant 0 : i32
    %c0_i32_2 = arith.constant 0 : i32
    return %c0_i32, %c0_i32_0, %c0_i32_1 : i32, i32, i32
  }
  func.func @transform_2(%arg0: i32, %arg1: i32) -> (i32, i32) {
    %c0_i32 = arith.constant 0 : i32
    %c0_i32_0 = arith.constant 0 : i32
    %c0_i32_1 = arith.constant 0 : i32
    return %c0_i32, %c0_i32_0 : i32, i32
  }
  func.func @transform_3(%arg0: i32, %arg1: i32) -> (i32, i32, i32, i32, i32) {
    %c0_i32 = arith.constant 0 : i32
    %c0_i32_0 = arith.constant 0 : i32
    %c0_i32_1 = arith.constant 0 : i32
    %c0_i32_2 = arith.constant 0 : i32
    return %arg0, %arg1, %c0_i32, %c0_i32_0, %c0_i32_1 : i32, i32, i32, i32, i32
  }
}

</mosaic_0001>

<llo_original>
// kernel: tpu_custom_call.1
$region0: #{tpu_custom_call.1}
  #allocation0 [shape = 'u32[]', space=smem, size = 0x4, offset = 0x4, fixed_abs, tag = 'smem constant byte address 0x4 - core index']
  #allocation1 [shape = 'u32[144,128]{1,0:T(1,128)}', space=vmem, size = 0x12000, scoped, tag = 'internal scratch']
  %s0 = inlined_call_operand.hbm [shape: f32[2,1,3,8,288], index: 0, kind: input, shape index: {}]
  %s1 = inlined_call_operand.hbm [shape: f32[4,8,32], index: 1, kind: input, shape index: {}]
  %s2 = inlined_call_operand.vmem [shape: f32[8,1], index: 2, kind: input, shape index: {}]
  %s3 = inlined_call_operand.hbm [shape: f32[2,1,4,8,256], index: 3, kind: output, shape index: {}]
  %s4 = sld [smem:[#allocation0]]
  $region53: #{tpu_custom_call.1} parent=0
    _
  %s6 = ssub.s32 1, %s4
  %s7 = scalar_select 0, %s6, %s4
  $region1: #{tpu_custom_call.1} parent=0
    #allocation2 [shape = 'u8[73728]{0}', space=vmem, size = 0x12000, scoped, tag = 'input window, operand 0']
    #allocation3 [shape = 's32[2]{0}', space=sflag, size = 0x8, scoped, tag = 'scoped memory for tpu_custom_call.1']
    #allocation4 [shape = 's32[2]{0}', space=sflag, size = 0x8, scoped, tag = 'scoped memory for tpu_custom_call.1']
    #allocation5 [shape = 'u8[16384]{0}', space=vmem, size = 0x4000, scoped, tag = 'input window, operand 1, single buffered']
    #allocation6 [shape = 's32[1]{0}', space=sflag, size = 0x4, scoped, tag = 'scoped memory for tpu_custom_call.1']
    #allocation7 [shape = 'u8[65536]{0}', space=vmem, size = 0x10000, scoped, tag = 'output window, operand 0']
    %8 = vsyncpa [#allocation3], 0
    %s9 = scalar_lea.sflag [#allocation3], 1
    %10 = vsyncpa %s9, 0
    %11 = vsyncpa [#allocation6], 0
    %12 = vsyncpa [#allocation4], 0
    %s13 = scalar_lea.sflag [#allocation4], 1
    %14 = vsyncpa %s13, 0
    loop: start=0, step=1, limit=4
    $region2: #{tpu_custom_call.1} parent=1 // loop_pre_header
      _
    $region3: #{tpu_custom_call.1} parent=1 // loop_header
      %s16 = sphi 0, %s20
      %p17 = scmp.ge.s32.totalorder %s16, 4
      %s23 = sphi 0, %s35
      %s24 = sphi 0, %s31
      %s25 = sphi 0, %s23
      %s26 = sphi 0, %s24
      %s27 = sphi 0, %s25
      %s28 = sphi 0, %s26
      %s40 = sphi 0, %s42
      %s43 = sphi 0, %s40
      %s44 = sphi 0, %s43
      %s60 = sphi 0, %s44
      %s64 = sphi 0, %s64
      %s66 = sphi 0, %s64
      %s67 = sphi 0, %s66
      %s81 = sphi 0, %s67
      %s85 = sphi 0, %s85
      %s87 = sphi 0, %s85
      %s88 = sphi 0, %s87
      %s102 = sphi 0, %s88
      %s110 = sphi 0, %s112
      %s113 = sphi 0, %s110
      %s114 = sphi 0, %s113
      %s130 = sphi 0, %s114
    $region4: #{tpu_custom_call.1} parent=1 // loop_header_branch
      %19 = sbr.rel (%p17) target = $region8
    $region5: #{tpu_custom_call.1} parent=1 // loop_body
      %s21 = ssub.s32 %s16, 1
      %s22 = ssub.s32 %s16, 2
      %s29 = sadd.s32 1, %s24
      %p30 = scmp.ge.s32.totalorder %s29, 1
      %s31 = scalar_select %p30, 0, %s29
      %s32 = sadd.s32 1, %s23
      %s33 = scalar_select %p30, %s32, %s23
      %p34 = scmp.ge.s32.totalorder %s33, 2
      %s35 = scalar_select %p34, 0, %s33
      %s36 = ssub.s32 %s23, %s35
      %s37 = ssub.s32 %s24, %s31
      %s38 = sor.u32 %s36, %s37
      %p39 = scmp.eq.s32.totalorder %s38, 0
      %s41 = sadd.s32 %s40, 1
      %s42 = scalar_select %p39, %s40, %s41
      %p45 = pneg %p39
      %p46 = scmp.eq.s32.totalorder %s16, 1
      %p47 = por %p45, %p46
      %p48 = scmp.ne.s32.totalorder %s40, %s43
      %p49 = scmp.eq.s32.totalorder %s16, 0
      %p50 = por %p48, %p49
      %p51 = scmp.ne.s32.totalorder %s40, %s43
      %p52 = scmp.eq.s32.totalorder %s21, 1
      %p53 = por %p51, %p52
      %p54 = scmp.ne.s32.totalorder %s43, %s44
      %p55 = scmp.eq.s32.totalorder %s21, 0
      %p56 = por %p54, %p55
      %p57 = scmp.ne.s32.totalorder %s43, %s44
      %p58 = scmp.eq.s32.totalorder %s22, 1
      %p59 = por %p57, %p58
      %p61 = scmp.ne.s32.totalorder %s44, %s60
      %p62 = scmp.eq.s32.totalorder %s22, 0
      %p63 = por %p61, %p62
      %s65 = sadd.s32 %s64, 1
      %p68 = scmp.eq.s32.totalorder %s16, 1
      %p69 = scmp.ne.s32.totalorder %s64, %s66
      %p70 = scmp.eq.s32.totalorder %s16, 0
      %p71 = por %p69, %p70
      %p72 = scmp.ne.s32.totalorder %s64, %s66
      %p73 = scmp.eq.s32.totalorder %s21, 1
      %p74 = por %p72, %p73
      %p75 = scmp.ne.s32.totalorder %s66, %s67
      %p76 = scmp.eq.s32.totalorder %s21, 0
      %p77 = por %p75, %p76
      %p78 = scmp.ne.s32.totalorder %s66, %s67
      %p79 = scmp.eq.s32.totalorder %s22, 1
      %p80 = por %p78, %p79
      %p82 = scmp.ne.s32.totalorder %s67, %s81
      %p83 = scmp.eq.s32.totalorder %s22, 0
      %p84 = por %p82, %p83
      %s86 = sadd.s32 %s85, 1
      %p89 = scmp.eq.s32.totalorder %s16, 1
      %p90 = scmp.ne.s32.totalorder %s85, %s87
      %p91 = scmp.eq.s32.totalorder %s16, 0
      %p92 = por %p90, %p91
      %p93 = scmp.ne.s32.totalorder %s85, %s87
      %p94 = scmp.eq.s32.totalorder %s21, 1
      %p95 = por %p93, %p94
      %p96 = scmp.ne.s32.totalorder %s87, %s88
      %p97 = scmp.eq.s32.totalorder %s21, 0
      %p98 = por %p96, %p97
      %p99 = scmp.ne.s32.totalorder %s87, %s88
      %p100 = scmp.eq.s32.totalorder %s22, 1
      %p101 = por %p99, %p100
      %p103 = scmp.ne.s32.totalorder %s88, %s102
      %p104 = scmp.eq.s32.totalorder %s22, 0
      %p105 = por %p103, %p104
      %s106 = ssub.s32 %s23, %s35
      %s107 = ssub.s32 %s24, %s31
      %s108 = sor.u32 %s106, %s107
      %p109 = scmp.eq.s32.totalorder %s108, 0
      %s111 = sadd.s32 %s110, 1
      %s112 = scalar_select %p109, %s110, %s111
      %p115 = pneg %p109
      %p116 = scmp.eq.s32.totalorder %s16, 1
      %p117 = por %p115, %p116
      %p118 = scmp.ne.s32.totalorder %s110, %s113
      %p119 = scmp.eq.s32.totalorder %s16, 0
      %p120 = por %p118, %p119
      %p121 = scmp.ne.s32.totalorder %s110, %s113
      %p122 = scmp.eq.s32.totalorder %s21, 1
      %p123 = por %p121, %p122
      %p124 = scmp.ne.s32.totalorder %s113, %s114
      %p125 = scmp.eq.s32.totalorder %s21, 0
      %p126 = por %p124, %p125
      %p127 = scmp.ne.s32.totalorder %s113, %s114
      %p128 = scmp.eq.s32.totalorder %s22, 1
      %p129 = por %p127, %p128
      %p131 = scmp.ne.s32.totalorder %s114, %s130
      %p132 = scmp.eq.s32.totalorder %s22, 0
      %p133 = por %p131, %p132
      %p134 = scmp.le.s32.totalorder 1, %s16
      %p135 = scmp.lt.s32.totalorder %s16, 3
      %p136 = pnand %p134, %p135
      %p137 = pneg %p136
      // Predicated region
      $region9: #{tpu_custom_call.1} parent=5 // pred_check
        _
      $region10: #{tpu_custom_call.1} parent=5 // pred_check_branch
        %139 = sbr.rel (%p136) target = $region12
      $region11: #{tpu_custom_call.1} parent=5 // pred_region
        %s140 = ssub.s32 %s16, 1
        // Predicated region
        $region13: #{tpu_custom_call.1} parent=11 // pred_check
          %p141 = pneg %p77
        $region14: #{tpu_custom_call.1} parent=11 // pred_check_branch
          %143 = sbr.rel (%p141) target = $region16
        $region15: #{tpu_custom_call.1} parent=11 // pred_region
          %s145 = ssub.s32 512, 512
          %146 = vsyncadd [#allocation6], %s145
          %s147 = sshll.u32 [#allocation5], 4
          %s148 = int_to_ptr.vmem [resolvable:$true] %s147
          %153 = dma.hbm_to_vmem [thread:$0]  %s1, 512, %s148, [#allocation6], 128, 128, 8
        $region16: #{tpu_custom_call.1} parent=11 // pred_fallthru
          _
        // Predicated region
        $region17: #{tpu_custom_call.1} parent=11 // pred_check
          %p154 = pneg %p98
        $region18: #{tpu_custom_call.1} parent=11 // pred_check_branch
          %156 = sbr.rel (%p154) target = $region20
        $region19: #{tpu_custom_call.1} parent=11 // pred_region
          _
        $region20: #{tpu_custom_call.1} parent=11 // pred_fallthru
          _
      $region12: #{tpu_custom_call.1} parent=5 // pred_fallthru
        _
      %p157 = scmp.lt.s32.totalorder %s16, 2
      // Predicated region
      $region21: #{tpu_custom_call.1} parent=5 // pred_check
        %p158 = pneg %p157
      $region22: #{tpu_custom_call.1} parent=5 // pred_check_branch
        %160 = sbr.rel (%p158) target = $region24
      $region23: #{tpu_custom_call.1} parent=5 // pred_region
        // Predicated region
        $region25: #{tpu_custom_call.1} parent=23 // pred_check
          %p161 = pneg %p50
        $region26: #{tpu_custom_call.1} parent=23 // pred_check_branch
          %163 = sbr.rel (%p161) target = $region28
        $region27: #{tpu_custom_call.1} parent=23 // pred_region
          %s164 = sand.u32 %s40, 1
          %s165 = scalar_lea.sflag [#allocation3], %s164
          %s166 = sand.u32 %s40, 1
          %s167 = smul.addr %s166, 72
          %s168 = scalar_lea.vmem [#allocation2], %s167
          %s170 = ssub.s32 1152, 1152
          %171 = vsyncadd %s165, %s170
          %s172 = smul.addr %s24, 9
          %s173 = smul.addr %s23, 9
          %s174 = sadd.s32 %s172, %s173
          %s175 = smul.addr %s174, 128
          %s176 = scalar_lea.hbm %s0, %s175
          %s177 = sshll.u32 %s168, 4
          %s178 = int_to_ptr.vmem [resolvable:$true] %s177
          %183 = dma.hbm_to_vmem [thread:$0]  %s176, 1152, %s178, %s165, 384, 384, 24
        $region28: #{tpu_custom_call.1} parent=23 // pred_fallthru
          _
      $region24: #{tpu_custom_call.1} parent=5 // pred_fallthru
        _
      %p184 = scmp.le.s32.totalorder 1, %s16
      %p185 = scmp.lt.s32.totalorder %s16, 3
      %p186 = pnand %p184, %p185
      %p187 = pneg %p186
      // Predicated region
      $region29: #{tpu_custom_call.1} parent=5 // pred_check
        _
      $region30: #{tpu_custom_call.1} parent=5 // pred_check_branch
        %189 = sbr.rel (%p186) target = $region32
      $region31: #{tpu_custom_call.1} parent=5 // pred_region
        %s190 = ssub.s32 %s16, 1
        %s191 = sand.u32 %s43, 1
        %s192 = scalar_lea.sflag [#allocation3], %s191
        %s193 = sand.u32 %s43, 1
        %s194 = smul.addr %s193, 72
        %s195 = scalar_lea.vmem [#allocation2], %s194
        // Predicated region
        $region33: #{tpu_custom_call.1} parent=31 // pred_check
          %p196 = pneg %p56
        $region34: #{tpu_custom_call.1} parent=31 // pred_check_branch
          %198 = sbr.rel (%p196) target = $region36
        $region35: #{tpu_custom_call.1} parent=31 // pred_region
          %199 = dma.done %s192, 1152
        $region36: #{tpu_custom_call.1} parent=31 // pred_fallthru
          _
        // Predicated region
        $region37: #{tpu_custom_call.1} parent=31 // pred_check
          %p200 = pneg %p77
        $region38: #{tpu_custom_call.1} parent=31 // pred_check_branch
          %202 = sbr.rel (%p200) target = $region40
        $region39: #{tpu_custom_call.1} parent=31 // pred_region
          %203 = dma.done [#allocation6], 512
        $region40: #{tpu_custom_call.1} parent=31 // pred_fallthru
          _
        %s204 = sand.u32 %s43, 1
        %s205 = scalar_lea.sflag [#allocation3], %s204
        %s206 = sand.u32 %s43, 1
        %s207 = smul.addr %s206, 72
        %s208 = scalar_lea.vmem [#allocation2], %s207
        %p209 = pneg %p56
        %p210 = pneg %p53
        %p211 = pneg %p77
        %p212 = pneg %p74
        %p213 = pneg %p98
        %p214 = pneg %p95
        %p215 = pneg %p126
        %p216 = pneg %p123
        %s217 = sand.u32 %s113, 1
        %s218 = scalar_lea.sflag [#allocation4], %s217
        %s219 = sand.u32 %s113, 1
        %s220 = smul.addr %s219, 64
        %s221 = scalar_lea.vmem [#allocation7], %s220
        %v222 = vld [vmem:[%s2] sm:$0xff]
        %224 = vset.pattern.permute.xlu0 0
        %225 = vperm.xlu0 %224, %v222
        %v226 = vpop.permute.xlu0 %225
        %v228 = vld [vmem:[%s195] sm:$0xff]
        %v229 = vld [vmem:[%s195 + $0x8] sm:$0xff]
        %s230 = scalar_lea.vmem %s195, 24 [#allocation2]
        %v231 = vld [vmem:[%s230] sm:$0xff]
        %v232 = vld [vmem:[%s230 + $0x8] sm:$0xff]
        %v233 = vld [vmem:[%s195 + $0x10] sm:$0xff]
        %v234 = vld [vmem:[%s230 + $0x10] sm:$0xff]
        %238 = vrot.lane.b32.xlu0 %v228, 112
        %v239 = vpop.permute.xlu0 %238
        %240 = vrot.lane.b32.xlu0 %v229, 112
        %v241 = vpop.permute.xlu0 %240
        %242 = vrot.lane.b32.xlu0 %v233, 112
        %v243 = vpop.permute.xlu0 %242
        %vm244 = vcmask 916480
        %v245 = vsel %vm244, %v239, %v241
        %v246 = vsel %vm244, %v241, %v243
        %252 = vrot.lane.b32.xlu0 %v231, 112
        %v253 = vpop.permute.xlu0 %252
        %254 = vrot.lane.b32.xlu0 %v232, 112
        %v255 = vpop.permute.xlu0 %254
        %256 = vrot.lane.b32.xlu0 %v234, 112
        %v257 = vpop.permute.xlu0 %256
        %v258 = vsel %vm244, %v253, %v255
        %v259 = vsel %vm244, %v255, %v257
        %v262 = vld [vmem:[#allocation5] sm:$0xff]
        %vm263 = vcmask 261120
        %v265 = vsel %vm263, %v262, 0
        %267 = vmatprep.subr.mxu0 0.0
        %268 = vmatpush1.msra.mxu0 0.0
        %269 = vmatprep.subr.mxu0 0.0
        %270 = vmatpush1.msra.mxu0 0.0
        %271 = vmatprep.subr.mxu0 0.0
        %272 = vmatpush1.msra.mxu0 0.0
        %273 = vmatprep.subr.mxu0 0.0
        %274 = vmatpush1.msra.mxu0 0.0
        %275 = vmatprep.subr.mxu0 0.0
        %276 = vmatpush1.msra.mxu0 0.0
        %277 = vmatprep.subr.mxu0 0.0
        %278 = vmatpush1.msra.mxu0 0.0
        %279 = vmatprep.subr.mxu0 0.0
        %280 = vmatpush1.msra.mxu0 0.0
        %281 = vmatprep.subr.mxu0 0.0
        %282 = vmatpush1.msra.mxu0 0.0
        %283 = vmatprep.subr.mxu0 0.0
        %284 = vmatpush1.msra.mxu0 0.0
        %285 = vmatprep.subr.mxu0 0.0
        %286 = vmatpush1.msra.mxu0 0.0
        %287 = vmatprep.subr.mxu0 0.0
        %288 = vmatpush1.msra.mxu0 0.0
        %289 = vmatprep.subr.mxu0 0.0
        %290 = vmatpush1.msra.mxu0 0.0
        %291 = vmatprep.subr.mxu0 %v259
        %292 = vmatpush1.msra.mxu0 %v258
        %293 = vmatprep.subr.mxu0 %v246
        %294 = vmatpush1.msra.mxu0 %v245
        %295 = vmatprep.subr.mxu0 %v232
        %296 = vmatpush1.msra.mxu0 %v231
        %297 = vmatprep.subr.mxu0 %v229
        %298 = vmatpush1.msra.mxu0 %v228
        %299 = vmatprep.subr.mxu0 0.0
        %300 = vmatpush2.msra.mxu0 0.0
        %301 = vmatprep.subr.mxu0 0.0
        %302 = vmatpush2.msra.mxu0 0.0
        %303 = vmatprep.subr.mxu0 0.0
        %304 = vmatpush2.msra.mxu0 0.0
        %305 = vmatprep.subr.mxu0 0.0
        %306 = vmatpush2.msra.mxu0 0.0
        %307 = vmatprep.subr.mxu0 0.0
        %308 = vmatpush2.msra.mxu0 0.0
        %309 = vmatprep.subr.mxu0 0.0
        %310 = vmatpush2.msra.mxu0 0.0
        %311 = vmatprep.subr.mxu0 0.0
        %312 = vmatpush2.msra.mxu0 0.0
        %313 = vmatprep.subr.mxu0 0.0
        %314 = vmatpush2.msra.mxu0 0.0
        %315 = vmatprep.subr.mxu0 0.0
        %316 = vmatpush2.msra.mxu0 0.0
        %317 = vmatprep.subr.mxu0 0.0
        %318 = vmatpush2.msra.mxu0 0.0
        %319 = vmatprep.subr.mxu0 0.0
        %320 = vmatpush2.msra.mxu0 0.0
        %321 = vmatprep.subr.mxu0 0.0
        %322 = vmatpush2.msra.mxu0 0.0
        %323 = vmatprep.subr.mxu0 0.0
        %324 = vmatpush2.msra.mxu0 0.0
        %325 = vmatprep.subr.mxu0 0.0
        %326 = vmatpush2.msra.mxu0 0.0
        %327 = vmatprep.subr.mxu0 0.0
        %328 = vmatpush2.msra.mxu0 0.0
        %329 = vmatprep.subr.mxu0 0.0
        %330 = vmatpush2.msra.mxu0 0.0
        %331 = vmatprep.mubr.f32.mxu0 0.0
        %332 = vmatmul.mubr.f32.gmra.mxu0 %v265
        %v333 = vpop.f32.mrf.mxu0
        %v334 = vadd.f32 %v226, %v333
        %v335 = vpop.f32.mrf.mxu0
        %v336 = vadd.f32 %v226, %v335
        %337 = vdwg.mxu0
        %338 = vst [vmem:[%s221] sm:$0xff] %v334
        %339 = vst [vmem:[%s221 + $0x8] sm:$0xff] %v336
        %s340 = scalar_lea.vmem %s195, 48 [#allocation2]
        %v341 = vld [vmem:[%s340] sm:$0xff]
        %v342 = vld [vmem:[%s340 + $0x8] sm:$0xff]
        %v343 = vld [vmem:[%s340 + $0x10] sm:$0xff]
        %347 = vrot.lane.b32.xlu0 %v341, 112
        %v348 = vpop.permute.xlu0 %347
        %349 = vrot.lane.b32.xlu0 %v342, 112
        %v350 = vpop.permute.xlu0 %349
        %351 = vrot.lane.b32.xlu0 %v343, 112
        %v352 = vpop.permute.xlu0 %351
        %v353 = vsel %vm244, %v348, %v350
        %v354 = vsel %vm244, %v350, %v352
        %s357 = scalar_lea.vmem [#allocation5], 8
        %v358 = vld [vmem:[%s357] sm:$0xff]
        %v360 = vsel %vm263, %v358, 0
        %362 = vmatprep.subr.mxu0 0.0
        %363 = vmatpush1.msra.mxu0 0.0
        %364 = vmatprep.subr.mxu0 0.0
        %365 = vmatpush1.msra.mxu0 0.0
        %366 = vmatprep.subr.mxu0 0.0
        %367 = vmatpush1.msra.mxu0 0.0
        %368 = vmatprep.subr.mxu0 0.0
        %369 = vmatpush1.msra.mxu0 0.0
        %370 = vmatprep.subr.mxu0 0.0
        %371 = vmatpush1.msra.mxu0 0.0
        %372 = vmatprep.subr.mxu0 0.0
        %373 = vmatpush1.msra.mxu0 0.0
        %374 = vmatprep.subr.mxu0 0.0
        %375 = vmatpush1.msra.mxu0 0.0
        %376 = vmatprep.subr.mxu0 0.0
        %377 = vmatpush1.msra.mxu0 0.0
        %378 = vmatprep.subr.mxu0 0.0
        %379 = vmatpush1.msra.mxu0 0.0
        %380 = vmatprep.subr.mxu0 0.0
        %381 = vmatpush1.msra.mxu0 0.0
        %382 = vmatprep.subr.mxu0 0.0
        %383 = vmatpush1.msra.mxu0 0.0
        %384 = vmatprep.subr.mxu0 0.0
        %385 = vmatpush1.msra.mxu0 0.0
        %386 = vmatprep.subr.mxu0 %v354
        %387 = vmatpush1.msra.mxu0 %v353
        %388 = vmatprep.subr.mxu0 %v259
        %389 = vmatpush1.msra.mxu0 %v258
        %390 = vmatprep.subr.mxu0 %v342
        %391 = vmatpush1.msra.mxu0 %v341
        %392 = vmatprep.subr.mxu0 %v232
        %393 = vmatpush1.msra.mxu0 %v231
        %394 = vmatprep.subr.mxu0 0.0
        %395 = vmatpush2.msra.mxu0 0.0
        %396 = vmatprep.subr.mxu0 0.0
        %397 = vmatpush2.msra.mxu0 0.0
        %398 = vmatprep.subr.mxu0 0.0
        %399 = vmatpush2.msra.mxu0 0.0
        %400 = vmatprep.subr.mxu0 0.0
        %401 = vmatpush2.msra.mxu0 0.0
        %402 = vmatprep.subr.mxu0 0.0
        %403 = vmatpush2.msra.mxu0 0.0
        %404 = vmatprep.subr.mxu0 0.0
        %405 = vmatpush2.msra.mxu0 0.0
        %406 = vmatprep.subr.mxu0 0.0
        %407 = vmatpush2.msra.mxu0 0.0
        %408 = vmatprep.subr.mxu0 0.0
        %409 = vmatpush2.msra.mxu0 0.0
        %410 = vmatprep.subr.mxu0 0.0
        %411 = vmatpush2.msra.mxu0 0.0
        %412 = vmatprep.subr.mxu0 0.0
        %413 = vmatpush2.msra.mxu0 0.0
        %414 = vmatprep.subr.mxu0 0.0
        %415 = vmatpush2.msra.mxu0 0.0
        %416 = vmatprep.subr.mxu0 0.0
        %417 = vmatpush2.msra.mxu0 0.0
        %418 = vmatprep.subr.mxu0 0.0
        %419 = vmatpush2.msra.mxu0 0.0
        %420 = vmatprep.subr.mxu0 0.0
        %421 = vmatpush2.msra.mxu0 0.0
        %422 = vmatprep.subr.mxu0 0.0
        %423 = vmatpush2.msra.mxu0 0.0
        %424 = vmatprep.subr.mxu0 0.0
        %425 = vmatpush2.msra.mxu0 0.0
        %426 = vmatprep.mubr.f32.mxu0 0.0
        %427 = vmatmul.mubr.f32.gmra.mxu0 %v360
        %v428 = vpop.f32.mrf.mxu0
        %v429 = vadd.f32 %v226, %v428
        %v430 = vpop.f32.mrf.mxu0
        %v431 = vadd.f32 %v226, %v430
        %432 = vdwg.mxu0
        %s433 = scalar_lea.vmem %s221, 16 [#allocation7]
        %434 = vst [vmem:[%s433] sm:$0xff] %v429
        %435 = vst [vmem:[%s433 + $0x8] sm:$0xff] %v431
        %v436 = vld [vmem:[%s195] sm:$0xff]
        %v437 = vld [vmem:[%s195 + $0x8] sm:$0xff]
        %v438 = vld [vmem:[%s195 + $0x10] sm:$0xff]
        %v439 = vld [vmem:[%s230] sm:$0xff]
        %v440 = vld [vmem:[%s230 + $0x8] sm:$0xff]
        %v441 = vld [vmem:[%s230 + $0x10] sm:$0xff]
        %445 = vrot.lane.b32.xlu0 %v436, 112
        %v446 = vpop.permute.xlu0 %445
        %447 = vrot.lane.b32.xlu0 %v437, 112
        %v448 = vpop.permute.xlu0 %447
        %449 = vrot.lane.b32.xlu0 %v438, 112
        %v450 = vpop.permute.xlu0 %449
        %v451 = vsel %vm244, %v446, %v448
        %v452 = vsel %vm244, %v448, %v450
        %456 = vrot.lane.b32.xlu0 %v439, 112
        %v457 = vpop.permute.xlu0 %456
        %458 = vrot.lane.b32.xlu0 %v440, 112
        %v459 = vpop.permute.xlu0 %458
        %460 = vrot.lane.b32.xlu0 %v441, 112
        %v461 = vpop.permute.xlu0 %460
        %v462 = vsel %vm244, %v457, %v459
        %v463 = vsel %vm244, %v459, %v461
        %s464 = scalar_lea.vmem [#allocation5], 16
        %v465 = vld [vmem:[%s464] sm:$0xff]
        %466 = vrot.lane.b32.xlu0 %v451, 112
        %v467 = vpop.permute.xlu0 %466
        %468 = vrot.lane.b32.xlu0 %v452, 112
        %v469 = vpop.permute.xlu0 %468
        %470 = vrot.lane.b32.xlu0 %v450, 112
        %v471 = vpop.permute.xlu0 %470
        %472 = vrot.lane.b32.xlu0 %v462, 112
        %v473 = vpop.permute.xlu0 %472
        %474 = vrot.lane.b32.xlu0 %v463, 112
        %v475 = vpop.permute.xlu0 %474
        %476 = vrot.lane.b32.xlu0 %v461, 112
        %v477 = vpop.permute.xlu0 %476
        %v478 = vsel %vm244, %v467, %v469
        %v479 = vsel %vm244, %v469, %v471
        %v480 = vsel %vm244, %v473, %v475
        %v481 = vsel %vm244, %v475, %v477
        %v487 = vsel %vm263, %v465, 0
        %489 = vmatprep.subr.mxu0 0.0
        %490 = vmatpush1.msra.mxu0 0.0
        %491 = vmatprep.subr.mxu0 0.0
        %492 = vmatpush1.msra.mxu0 0.0
        %493 = vmatprep.subr.mxu0 0.0
        %494 = vmatpush1.msra.mxu0 0.0
        %495 = vmatprep.subr.mxu0 0.0
        %496 = vmatpush1.msra.mxu0 0.0
        %497 = vmatprep.subr.mxu0 0.0
        %498 = vmatpush1.msra.mxu0 0.0
        %499 = vmatprep.subr.mxu0 0.0
        %500 = vmatpush1.msra.mxu0 0.0
        %501 = vmatprep.subr.mxu0 0.0
        %502 = vmatpush1.msra.mxu0 0.0
        %503 = vmatprep.subr.mxu0 0.0
        %504 = vmatpush1.msra.mxu0 0.0
        %505 = vmatprep.subr.mxu0 0.0
        %506 = vmatpush1.msra.mxu0 0.0
        %507 = vmatprep.subr.mxu0 0.0
        %508 = vmatpush1.msra.mxu0 0.0
        %509 = vmatprep.subr.mxu0 0.0
        %510 = vmatpush1.msra.mxu0 0.0
        %511 = vmatprep.subr.mxu0 0.0
        %512 = vmatpush1.msra.mxu0 0.0
        %513 = vmatprep.subr.mxu0 %v481
        %514 = vmatpush1.msra.mxu0 %v480
        %515 = vmatprep.subr.mxu0 %v479
        %516 = vmatpush1.msra.mxu0 %v478
        %517 = vmatprep.subr.mxu0 %v259
        %518 = vmatpush1.msra.mxu0 %v258
        %519 = vmatprep.subr.mxu0 %v246
        %520 = vmatpush1.msra.mxu0 %v245
        %521 = vmatprep.subr.mxu0 0.0
        %522 = vmatpush2.msra.mxu0 0.0
        %523 = vmatprep.subr.mxu0 0.0
        %524 = vmatpush2.msra.mxu0 0.0
        %525 = vmatprep.subr.mxu0 0.0
        %526 = vmatpush2.msra.mxu0 0.0
        %527 = vmatprep.subr.mxu0 0.0
        %528 = vmatpush2.msra.mxu0 0.0
        %529 = vmatprep.subr.mxu0 0.0
        %530 = vmatpush2.msra.mxu0 0.0
        %531 = vmatprep.subr.mxu0 0.0
        %532 = vmatpush2.msra.mxu0 0.0
        %533 = vmatprep.subr.mxu0 0.0
        %534 = vmatpush2.msra.mxu0 0.0
        %535 = vmatprep.subr.mxu0 0.0
        %536 = vmatpush2.msra.mxu0 0.0
        %537 = vmatprep.subr.mxu0 0.0
        %538 = vmatpush2.msra.mxu0 0.0
        %539 = vmatprep.subr.mxu0 0.0
        %540 = vmatpush2.msra.mxu0 0.0
        %541 = vmatprep.subr.mxu0 0.0
        %542 = vmatpush2.msra.mxu0 0.0
        %543 = vmatprep.subr.mxu0 0.0
        %544 = vmatpush2.msra.mxu0 0.0
        %545 = vmatprep.subr.mxu0 0.0
        %546 = vmatpush2.msra.mxu0 0.0
        %547 = vmatprep.subr.mxu0 0.0
        %548 = vmatpush2.msra.mxu0 0.0
        %549 = vmatprep.subr.mxu0 0.0
        %550 = vmatpush2.msra.mxu0 0.0
        %551 = vmatprep.subr.mxu0 0.0
        %552 = vmatpush2.msra.mxu0 0.0
        %553 = vmatprep.mubr.f32.mxu0 0.0
        %554 = vmatmul.mubr.f32.gmra.mxu0 %v487
        %v555 = vpop.f32.mrf.mxu0
        %v556 = vadd.f32 %v226, %v555
        %v557 = vpop.f32.mrf.mxu0
        %v558 = vadd.f32 %v226, %v557
        %559 = vdwg.mxu0
        %s560 = scalar_lea.vmem %s221, 32 [#allocation7]
        %561 = vst [vmem:[%s560] sm:$0xff] %v556
        %562 = vst [vmem:[%s560 + $0x8] sm:$0xff] %v558
        %v563 = vld [vmem:[%s340] sm:$0xff]
        %v564 = vld [vmem:[%s340 + $0x8] sm:$0xff]
        %v565 = vld [vmem:[%s340 + $0x10] sm:$0xff]
        %569 = vrot.lane.b32.xlu0 %v563, 112
        %v570 = vpop.permute.xlu0 %569
        %571 = vrot.lane.b32.xlu0 %v564, 112
        %v572 = vpop.permute.xlu0 %571
        %573 = vrot.lane.b32.xlu0 %v565, 112
        %v574 = vpop.permute.xlu0 %573
        %v575 = vsel %vm244, %v570, %v572
        %v576 = vsel %vm244, %v572, %v574
        %s577 = scalar_lea.vmem [#allocation5], 24
        %v578 = vld [vmem:[%s577] sm:$0xff]
        %579 = vrot.lane.b32.xlu0 %v575, 112
        %v580 = vpop.permute.xlu0 %579
        %581 = vrot.lane.b32.xlu0 %v576, 112
        %v582 = vpop.permute.xlu0 %581
        %583 = vrot.lane.b32.xlu0 %v574, 112
        %v584 = vpop.permute.xlu0 %583
        %v585 = vsel %vm244, %v580, %v582
        %v586 = vsel %vm244, %v582, %v584
        %v590 = vsel %vm263, %v578, 0
        %592 = vmatprep.subr.mxu0 0.0
        %593 = vmatpush1.msra.mxu0 0.0
        %594 = vmatprep.subr.mxu0 0.0
        %595 = vmatpush1.msra.mxu0 0.0
        %596 = vmatprep.subr.mxu0 0.0
        %597 = vmatpush1.msra.mxu0 0.0
        %598 = vmatprep.subr.mxu0 0.0
        %599 = vmatpush1.msra.mxu0 0.0
        %600 = vmatprep.subr.mxu0 0.0
        %601 = vmatpush1.msra.mxu0 0.0
        %602 = vmatprep.subr.mxu0 0.0
        %603 = vmatpush1.msra.mxu0 0.0
        %604 = vmatprep.subr.mxu0 0.0
        %605 = vmatpush1.msra.mxu0 0.0
        %606 = vmatprep.subr.mxu0 0.0
        %607 = vmatpush1.msra.mxu0 0.0
        %608 = vmatprep.subr.mxu0 0.0
        %609 = vmatpush1.msra.mxu0 0.0
        %610 = vmatprep.subr.mxu0 0.0
        %611 = vmatpush1.msra.mxu0 0.0
        %612 = vmatprep.subr.mxu0 0.0
        %613 = vmatpush1.msra.mxu0 0.0
        %614 = vmatprep.subr.mxu0 0.0
        %615 = vmatpush1.msra.mxu0 0.0
        %616 = vmatprep.subr.mxu0 %v586
        %617 = vmatpush1.msra.mxu0 %v585
        %618 = vmatprep.subr.mxu0 %v481
        %619 = vmatpush1.msra.mxu0 %v480
        %620 = vmatprep.subr.mxu0 %v354
        %621 = vmatpush1.msra.mxu0 %v353
        %622 = vmatprep.subr.mxu0 %v259
        %623 = vmatpush1.msra.mxu0 %v258
        %624 = vmatprep.subr.mxu0 0.0
        %625 = vmatpush2.msra.mxu0 0.0
        %626 = vmatprep.subr.mxu0 0.0
        %627 = vmatpush2.msra.mxu0 0.0
        %628 = vmatprep.subr.mxu0 0.0
        %629 = vmatpush2.msra.mxu0 0.0
        %630 = vmatprep.subr.mxu0 0.0
        %631 = vmatpush2.msra.mxu0 0.0
        %632 = vmatprep.subr.mxu0 0.0
        %633 = vmatpush2.msra.mxu0 0.0
        %634 = vmatprep.subr.mxu0 0.0
        %635 = vmatpush2.msra.mxu0 0.0
        %636 = vmatprep.subr.mxu0 0.0
        %637 = vmatpush2.msra.mxu0 0.0
        %638 = vmatprep.subr.mxu0 0.0
        %639 = vmatpush2.msra.mxu0 0.0
        %640 = vmatprep.subr.mxu0 0.0
        %641 = vmatpush2.msra.mxu0 0.0
        %642 = vmatprep.subr.mxu0 0.0
        %643 = vmatpush2.msra.mxu0 0.0
        %644 = vmatprep.subr.mxu0 0.0
        %645 = vmatpush2.msra.mxu0 0.0
        %646 = vmatprep.subr.mxu0 0.0
        %647 = vmatpush2.msra.mxu0 0.0
        %648 = vmatprep.subr.mxu0 0.0
        %649 = vmatpush2.msra.mxu0 0.0
        %650 = vmatprep.subr.mxu0 0.0
        %651 = vmatpush2.msra.mxu0 0.0
        %652 = vmatprep.subr.mxu0 0.0
        %653 = vmatpush2.msra.mxu0 0.0
        %654 = vmatprep.subr.mxu0 0.0
        %655 = vmatpush2.msra.mxu0 0.0
        %656 = vmatprep.mubr.f32.mxu0 0.0
        %657 = vmatmul.mubr.f32.gmra.mxu0 %v590
        %v658 = vpop.f32.mrf.mxu0
        %v659 = vadd.f32 %v226, %v658
        %v660 = vpop.f32.mrf.mxu0
        %v661 = vadd.f32 %v226, %v660
        %662 = vdwg.mxu0
        %s663 = scalar_lea.vmem %s221, 48 [#allocation7]
        %664 = vst [vmem:[%s663] sm:$0xff] %v659
        %665 = vst [vmem:[%s663 + $0x8] sm:$0xff] %v661
        %s666 = sand.u32 %s113, 1
        %s667 = scalar_lea.sflag [#allocation4], %s666
        %s668 = sand.u32 %s113, 1
        %s669 = smul.addr %s668, 64
        %s670 = scalar_lea.vmem [#allocation7], %s669
        // Predicated region
        $region41: #{tpu_custom_call.1} parent=31 // pred_check
          %p671 = pneg %p123
        $region42: #{tpu_custom_call.1} parent=31 // pred_check_branch
          %673 = sbr.rel (%p671) target = $region44
        $region43: #{tpu_custom_call.1} parent=31 // pred_region
          %s675 = ssub.s32 1024, 1024
          %676 = vsyncadd %s667, %s675
          %s677 = smul.addr %s26, 8
          %s678 = smul.addr %s25, 8
          %s679 = sadd.s32 %s677, %s678
          %s680 = smul.addr %s679, 128
          %s681 = scalar_lea.hbm %s3, %s680
          %s682 = sshll.u32 %s670, 4
          %s683 = int_to_ptr.vmem [resolvable:$true] %s682
          %688 = dma.vmem_to_hbm [thread:$0]  %s683, 1024, %s681, %s667, 256, 256, 16
        $region44: #{tpu_custom_call.1} parent=31 // pred_fallthru
          _
      $region32: #{tpu_custom_call.1} parent=5 // pred_fallthru
        _
      %p689 = scmp.le.s32.totalorder 2, %s16
      // Predicated region
      $region45: #{tpu_custom_call.1} parent=5 // pred_check
        %p690 = pneg %p689
      $region46: #{tpu_custom_call.1} parent=5 // pred_check_branch
        %692 = sbr.rel (%p690) target = $region48
      $region47: #{tpu_custom_call.1} parent=5 // pred_region
        %s693 = ssub.s32 %s16, 2
        // Predicated region
        $region49: #{tpu_custom_call.1} parent=47 // pred_check
          %p694 = pneg %p129
        $region50: #{tpu_custom_call.1} parent=47 // pred_check_branch
          %696 = sbr.rel (%p694) target = $region52
        $region51: #{tpu_custom_call.1} parent=47 // pred_region
          %s697 = sand.u32 %s114, 1
          %s698 = scalar_lea.sflag [#allocation4], %s697
          %s699 = sand.u32 %s114, 1
          %s700 = smul.addr %s699, 64
          %s701 = scalar_lea.vmem [#allocation7], %s700
          %702 = dma.done %s698, 1024
        $region52: #{tpu_custom_call.1} parent=47 // pred_fallthru
          _
      $region48: #{tpu_custom_call.1} parent=5 // pred_fallthru
        _
    $region6: #{tpu_custom_call.1} parent=1 // loop_footer
      %s20 = sadd.s32 1, %s16
    $region7: #{tpu_custom_call.1} parent=1 // loop_footer_branch
      %15 = sbr.rel target = $region3
    $region8: #{tpu_custom_call.1} parent=1 // loop_exit
      _
    %703 = vsyncpa [#allocation3], 1
    %s704 = scalar_lea.sflag [#allocation3], 1
    %705 = vsyncpa %s704, 1
    %706 = vsyncpa [#allocation6], 1
    %707 = vsyncpa [#allocation4], 1
    %s708 = scalar_lea.sflag [#allocation4], 1
    %709 = vsyncpa %s708, 1

</llo_original>
